<compile_context>
chip_gen: v7x
topology: tpu7x:2x2x1
jax: 0.10.0
libtpu: 0.0.40
codegen_flags: <defaults>
</compile_context>

<pallas_src>
import jax
import jax.numpy as jnp
from jax.experimental import pallas as pl
from jax.experimental.pallas import tpu as pltpu


# Maximum number of independent HBM->HBM DMAs issued for one copy (kept in flight together).
_NUM_DMA_CHUNKS = 4


def _chunk_bounds(b):
    """Row boundaries for chunked DMAs: multiples of 8 (sublane tile), last bound == b."""
    if b < 2 * 8:
        return [0, b]  # single whole-array DMA for tiny inputs
    nc = min(_NUM_DMA_CHUNKS, b // 8)
    bounds = [((i * b) // nc) // 8 * 8 for i in range(nc)] + [b]
    return bounds


def _identity_copy(x):
    """Identity copy of a 2-D (b, f) array via chunked HBM->HBM DMAs (no VMEM round trip)."""
    b, f = x.shape
    n = b * f
    itemsize = jnp.dtype(x.dtype).itemsize
    bounds = _chunk_bounds(b)
    num_chunks = len(bounds) - 1

    def kernel(x_hbm, o_hbm, sems):
        copies = []
        # Static Python loop (num_chunks is small and known at trace time): issue every DMA,
        # then wait on all of them so the DMA engines overlap.
        for c in range(num_chunks):
            lo = bounds[c]
            sz = bounds[c + 1] - bounds[c]
            cp = pltpu.make_async_copy(
                x_hbm.at[pl.ds(lo, sz), :],
                o_hbm.at[pl.ds(lo, sz), :],
                sems.at[c],
            )
            cp.start()
            copies.append(cp)
        for cp in copies:
            cp.wait()

    return pl.pallas_call(
        kernel,
        out_shape=jax.ShapeDtypeStruct((b, f), x.dtype),
        in_specs=[pl.BlockSpec(memory_space=pl.ANY)],    # raw HBM ref, no auto-DMA / no VMEM
        out_specs=pl.BlockSpec(memory_space=pl.ANY),     # raw HBM ref, written by DMA
        scratch_shapes=[pltpu.SemaphoreType.DMA((num_chunks,))],
        cost_estimate=pl.CostEstimate(
            flops=0, transcendentals=0, bytes_accessed=2 * n * itemsize
        ),
    )(x)


class Reshape:
    """JAX/Pallas port of the PyTorch Reshape module."""

    def __init__(self, size):
        size = list(size)
        size.reverse()           # mirrors `size.reverse()` in the torch __init__
        self.size = size
        print(self.size)

    def __call__(self, x):
        b, _ = x.shape
        y = _identity_copy(x)
        # torch: self.size.insert(0, b); torch.reshape(x, self.size)
        # Row-major reshape is pure metadata — kept in plain JAX as glue (and self.size is
        # intentionally NOT mutated, so repeated forward calls behave correctly).
        return jnp.reshape(y, (b, *self.size))


if __name__ == "__main__":
    key = jax.random.PRNGKey(0)

    # Case 1: small shapes consistent with the module: batch=2, features=64,
    # target size=[16, 4] -> reversed to [4, 16] -> output (2, 4, 16).
    # (b=2 < 16 -> single whole-array HBM->HBM DMA path.)
    b, features = 2, 64
    size = [16, 4]
    x = jax.random.normal(key, (b, features), dtype=jnp.float32)

    module = Reshape(size)
    y = jax.block_until_ready(module(x))

    y_ref = jnp.reshape(x, (b, 4, 16))
    assert y.shape == (b, 4, 16), y.shape
    assert y.dtype == x.dtype
    assert bool(jnp.all(y == y_ref))

    # Case 2: larger input that exercises the chunked multi-DMA path
    # (b=256 -> 4 DMAs of 64 rows x 4096 cols each, all in flight together).
    b2, f2 = 256, 4096
    size2 = [64, 64]
    x2 = jax.random.normal(jax.random.PRNGKey(1), (b2, f2), dtype=jnp.float32)

    module2 = Reshape(size2)
    y2 = jax.block_until_ready(module2(x2))

    y2_ref = jnp.reshape(x2, (b2, 64, 64))
    assert y2.shape == (b2, 64, 64), y2.shape
    assert y2.dtype == x2.dtype
    assert bool(jnp.all(y2 == y2_ref))

    print("KERNEL_OK")
</pallas_src>

<mosaic_0001>
module attributes {stable_mosaic.version = 11 : i64} {
  func.func @kernel(%arg0: memref<2x64xf32, #tpu.memory_space<any>>, %arg1: memref<2x64xf32, #tpu.memory_space<any>>, %arg2: memref<1x!tpu.dma_semaphore, #tpu.memory_space<semaphore_mem>>) attributes {dimension_semantics = [], scalar_prefetch = 0 : i64, scratch_operands = 1 : i64, tpu.core_type = #tpu.core_type<tc>} {
    %c0_i32 = arith.constant 0 : i32
    %c0_i32_0 = arith.constant 0 : i32
    %c0_i32_1 = arith.constant 0 : i32
    %0 = tpu.memref_slice %arg0[%c0_i32_0, %c0_i32_1] : memref<2x64xf32, #tpu.memory_space<any>> -> memref<2x64xf32, #tpu.memory_space<any>>
    %c0_i32_2 = arith.constant 0 : i32
    %c0_i32_3 = arith.constant 0 : i32
    %1 = tpu.memref_slice %arg1[%c0_i32_2, %c0_i32_3] : memref<2x64xf32, #tpu.memory_space<any>> -> memref<2x64xf32, #tpu.memory_space<any>>
    %2 = tpu.memref_slice %arg2[%c0_i32] : memref<1x!tpu.dma_semaphore, #tpu.memory_space<semaphore_mem>> -> memref<1x!tpu.dma_semaphore, #tpu.memory_space<semaphore_mem>>
    %3 = tpu.memref_squeeze %2 : memref<1x!tpu.dma_semaphore, #tpu.memory_space<semaphore_mem>> -> memref<!tpu.dma_semaphore, #tpu.memory_space<semaphore_mem>>
    tpu.enqueue_dma source(%0 : memref<2x64xf32, #tpu.memory_space<any>>) target(%1 : memref<2x64xf32, #tpu.memory_space<any>>) target_semaphore(%3 : memref<!tpu.dma_semaphore, #tpu.memory_space<semaphore_mem>>)
    %c0_i32_4 = arith.constant 0 : i32
    %c0_i32_5 = arith.constant 0 : i32
    %c0_i32_6 = arith.constant 0 : i32
    %4 = tpu.memref_slice %arg0[%c0_i32_5, %c0_i32_6] : memref<2x64xf32, #tpu.memory_space<any>> -> memref<2x64xf32, #tpu.memory_space<any>>
    %c0_i32_7 = arith.constant 0 : i32
    %c0_i32_8 = arith.constant 0 : i32
    %5 = tpu.memref_slice %arg1[%c0_i32_7, %c0_i32_8] : memref<2x64xf32, #tpu.memory_space<any>> -> memref<2x64xf32, #tpu.memory_space<any>>
    %6 = tpu.memref_slice %arg2[%c0_i32_4] : memref<1x!tpu.dma_semaphore, #tpu.memory_space<semaphore_mem>> -> memref<1x!tpu.dma_semaphore, #tpu.memory_space<semaphore_mem>>
    %7 = tpu.memref_squeeze %6 : memref<1x!tpu.dma_semaphore, #tpu.memory_space<semaphore_mem>> -> memref<!tpu.dma_semaphore, #tpu.memory_space<semaphore_mem>>
    tpu.wait_dma2 semaphore(%7 : memref<!tpu.dma_semaphore, #tpu.memory_space<semaphore_mem>>) src(%4 : memref<2x64xf32, #tpu.memory_space<any>>) dst(%5 : memref<2x64xf32, #tpu.memory_space<any>>)
    return
  }
}

</mosaic_0001>

<llo_original>
// kernel: tpu_custom_call.1
$region0: #{tpu_custom_call.1}
  #allocation0 [shape = 'u32[]', space=smem, size = 0x4, offset = 0x4, fixed_abs, tag = 'smem constant byte address 0x4 - core index']
  #allocation1 [shape = 'u32[144,128]{1,0:T(1,128)}', space=vmem, size = 0x12000, scoped, tag = 'internal scratch']
  #allocation2 [shape = 's32[1]{0}', space=sflag, size = 0x4, scoped, tag = 'scratch operand']
  #allocation3 [shape = 's32[]', space=sflag, size = 0x4, offset = 0, fixed_abs, tag = 'sflag constant byte address 0x0 - dummy sync flag']
  #allocation4 [shape = 'u32[0]{0}', space=smem, size = 0, offset = 0, fixed_abs, tag = 'smem constant byte address 0x0 - null']
  %s0 = inlined_call_operand.hbm [shape: f32[2,64], index: 0, kind: input, shape index: {}]
  %s1 = inlined_call_operand.hbm [shape: f32[2,64], index: 1, kind: output, shape index: {}]
  %s2 = sld [smem:[#allocation0]]
  $region2: #{tpu_custom_call.1} parent=0
    _
  %s4 = ssub.s32 1, %s2
  %s5 = scalar_select 0, %s4, %s2
  %s7 = sshll.u32 1, 14
  %s8 = sxor.u32 4294967295, %s7
  %s11 = sshll.u32 3, 24
  %s12 = sxor.u32 4294967295, %s11
  %s13 = sand.u32 0, %s12
  %s15 = sor.u32 %s13, 0
  %18 = dma.general %s0, 32, %s1, [#allocation2], [#allocation3], [#allocation4], %s15, 0
  %s19 = smul.u32 2, 1
  %s20 = sshll.u32 %s19, 4
  %21 = dma.done [#allocation2], %s20
  %22 = vsyncmov [#allocation2]
  %s23 = vpop.sfrf %22
  %p24 = scmp.eq.s32.totalorder %s23, 0
  %p25 = pneg %p24
  %27 = shalt.err (%p25)

</llo_original>
